<compile_context>
chip_gen: v7x
topology: tpu7x:2x2x1
jax: 0.10.0
libtpu: 0.0.40
codegen_flags: <defaults>
</compile_context>

<pallas_src>
import functools
import math

import jax
import jax.numpy as jnp
from jax import lax
from jax.experimental import pallas as pl
from jax.experimental.pallas import tpu as pltpu

_LANE = 128
_DEFAULT_BLOCK_ROWS = 2048  # 2048 x 128 x 4B = 1 MiB per f32 block


def _round_up(x, m):
    return ((x + m - 1) // m) * m


def _splitmix32(x):
    """lowbias32 mixer: good 32-bit finalizer, pure VPU int ops."""
    x = x ^ (x >> jnp.uint32(16))
    x = x * jnp.uint32(0x21F0AAAD)
    x = x ^ (x >> jnp.uint32(15))
    x = x * jnp.uint32(0x735A2D97)
    x = x ^ (x >> jnp.uint32(15))
    return x


def _lrp_noise_kernel(seed_ref, x_ref, o_ref, *, p, block_rows):
    half = block_rows // 2
    lane = x_ref.shape[1]

    # Global pair index: each (u1, u2) pair yields TWO normals (both
    # Box-Muller branches), covering two rows' worth of the block.
    base = (pl.program_id(0) * (half * lane)).astype(jnp.uint32)
    row = lax.broadcasted_iota(jnp.int32, (half, lane), 0).astype(jnp.uint32)
    col = lax.broadcasted_iota(jnp.int32, (half, lane), 1).astype(jnp.uint32)
    pair_idx = base + row * jnp.uint32(lane) + col

    # Decorrelate the seed from the counter stream before mixing.
    stream = _splitmix32(seed_ref[0].astype(jnp.uint32) + jnp.uint32(0x9E3779B9))
    c = (pair_idx + stream) * jnp.uint32(2)
    bits1 = _splitmix32(c)
    bits2 = _splitmix32(c + jnp.uint32(1))

    # uint32 -> uniform in (0, 1): low 24 bits, centered in the bin (log-safe).
    inv24 = jnp.float32(1.0 / 16777216.0)
    u1 = ((bits1 & jnp.uint32(0xFFFFFF)).astype(jnp.int32).astype(jnp.float32)
          + jnp.float32(0.5)) * inv24
    u2 = ((bits2 & jnp.uint32(0xFFFFFF)).astype(jnp.int32).astype(jnp.float32)
          + jnp.float32(0.5)) * inv24

    # Box-Muller, both branches; fold p into the radius (saves one VPU mul/elt).
    r = jnp.float32(p) * jnp.sqrt(jnp.float32(-2.0) * jnp.log(u1))
    theta = jnp.float32(2.0 * math.pi) * u2
    z1 = r * jnp.cos(theta)
    z2 = r * jnp.sin(theta)
    noise = jnp.concatenate([z1, z2], axis=0)  # (block_rows, lane)

    o_ref[...] = (x_ref[...].astype(jnp.float32) + noise).astype(o_ref.dtype)


def lrp_noise_forward(x, p, seed=0, block_rows=_DEFAULT_BLOCK_ROWS):
    """x + p * N(0, 1) noise, matching LRP_noise.forward in train mode."""
    orig_shape = x.shape
    dtype = x.dtype
    n = x.size

    # Flatten to a lane-dense (rows, 128) slab. Only pad when n % 128 != 0
    # (at most 127 elements); the common NCHW activation sizes skip this.
    xf = x.reshape(-1)
    rem = n % _LANE
    if rem:
        xf = jnp.pad(xf, (0, _LANE - rem))
    rows = xf.size // _LANE
    x2 = xf.reshape(rows, _LANE)

    # Block rows: multiple of 16 (so the half-split stays sublane-aligned),
    # capped at ~1 MiB/block -> ~4 MiB resident with 2-deep pipelining on
    # in+out, comfortable on v5e/v6e (128 MiB) and v7x (64 MiB) VMEM.
    br = min(block_rows, _round_up(rows, 16))
    grid = (pl.cdiv(rows, br),)

    seed_arr = jnp.array([seed], dtype=jnp.int32)
    itemsize = jnp.dtype(dtype).itemsize

    out2 = pl.pallas_call(
        functools.partial(_lrp_noise_kernel, p=float(p), block_rows=br),
        out_shape=jax.ShapeDtypeStruct((rows, _LANE), dtype),
        grid_spec=pltpu.PrefetchScalarGridSpec(
            num_scalar_prefetch=1,
            grid=grid,
            in_specs=[pl.BlockSpec((br, _LANE), lambda i, seed: (i, 0))],
            out_specs=pl.BlockSpec((br, _LANE), lambda i, seed: (i, 0)),
        ),
        compiler_params=pltpu.CompilerParams(
            # Stateless counter-based RNG -> safe to shard across TCs (v7x).
            dimension_semantics=("parallel",),
            vmem_limit_bytes=32 * 1024 * 1024,
        ),
        cost_estimate=pl.CostEstimate(
            flops=int(30 * n),
            transcendentals=int(2 * n),  # (log+sqrt+cos+sin) per 2 elements
            bytes_accessed=int(2 * n * itemsize),
        ),
    )(seed_arr, x2)

    outf = out2.reshape(-1)
    if rem:
        outf = outf[:n]
    return outf.reshape(orig_shape)


# relprop(R) = R : identity, no kernel needed.
def lrp_noise_relprop(R):
    return R


if __name__ == "__main__":
    key = jax.random.PRNGKey(0)
    # Small NCHW input consistent with an LRP conv-net activation.
    x = jax.random.normal(key, (2, 4, 16, 16), dtype=jnp.float32)
    p = 0.1

    y = lrp_noise_forward(x, p, seed=0)
    y = jax.block_until_ready(y)

    assert y.shape == x.shape and y.dtype == x.dtype
    resid = y - x
    assert bool(jnp.all(jnp.isfinite(y)))
    assert float(jnp.max(jnp.abs(resid))) > 0.0
    # Residual should look like p * N(0,1): std within [0.5p, 1.5p].
    std = float(jnp.std(resid))
    assert 0.5 * p < std < 1.5 * p, std

    # relprop identity check.
    assert jnp.array_equal(lrp_noise_relprop(y), y)

    print("KERNEL_OK")
</pallas_src>

<mosaic_0001>
module attributes {stable_mosaic.version = 11 : i64} {
  func.func @_lrp_noise_kernel(%arg0: i32, %arg1: memref<1xi32, #tpu.memory_space<smem>>, %arg2: memref<16x128xf32, #tpu.memory_space<vmem>>, %arg3: memref<16x128xf32, #tpu.memory_space<vmem>>) attributes {dimension_semantics = [#tpu.dimension_semantics<parallel>], iteration_bounds = array<i64: 1>, scalar_prefetch = 1 : i64, scratch_operands = 0 : i64, tpu.core_type = #tpu.core_type<tc>, window_params = [{transform_indices = @transform_0, window_bounds = array<i64: 16, 128>}, {transform_indices = @transform_1, window_bounds = array<i64: 16, 128>}]} {
    %c1024_i32 = arith.constant 1024 : i32
    %0 = arith.muli %arg0, %c1024_i32 : i32
    %1 = tpu.iota {dimensions = array<i32: 0>} : vector<8x128xi32>
    %2 = tpu.iota {dimensions = array<i32: 1>} : vector<8x128xi32>
    %c128_i32 = arith.constant 128 : i32
    %3 = vector.broadcast %c128_i32 : i32 to vector<8x128xi32>
    %4 = arith.muli %1, %3 : vector<8x128xi32>
    %5 = vector.broadcast %0 : i32 to vector<8x128xi32>
    %6 = arith.addi %5, %4 : vector<8x128xi32>
    %7 = arith.addi %6, %2 : vector<8x128xi32>
    %c0 = arith.constant 0 : index
    %8 = memref.load %arg1[%c0] : memref<1xi32, #tpu.memory_space<smem>>
    %c-1640531527_i32 = arith.constant -1640531527 : i32
    %9 = arith.addi %8, %c-1640531527_i32 : i32
    %c16_i32 = arith.constant 16 : i32
    %10 = arith.shrui %9, %c16_i32 : i32
    %11 = arith.xori %9, %10 : i32
    %c569420461_i32 = arith.constant 569420461 : i32
    %12 = arith.muli %11, %c569420461_i32 : i32
    %c15_i32 = arith.constant 15 : i32
    %13 = arith.shrui %12, %c15_i32 : i32
    %14 = arith.xori %12, %13 : i32
    %c1935289751_i32 = arith.constant 1935289751 : i32
    %15 = arith.muli %14, %c1935289751_i32 : i32
    %c15_i32_0 = arith.constant 15 : i32
    %16 = arith.shrui %15, %c15_i32_0 : i32
    %17 = arith.xori %15, %16 : i32
    %18 = vector.broadcast %17 : i32 to vector<8x128xi32>
    %19 = arith.addi %7, %18 : vector<8x128xi32>
    %c2_i32 = arith.constant 2 : i32
    %20 = vector.broadcast %c2_i32 : i32 to vector<8x128xi32>
    %21 = arith.muli %19, %20 : vector<8x128xi32>
    %c16_i32_1 = arith.constant 16 : i32
    %22 = vector.broadcast %c16_i32_1 : i32 to vector<8x128xi32>
    %23 = arith.shrui %21, %22 : vector<8x128xi32>
    %24 = arith.xori %21, %23 : vector<8x128xi32>
    %c569420461_i32_2 = arith.constant 569420461 : i32
    %25 = vector.broadcast %c569420461_i32_2 : i32 to vector<8x128xi32>
    %26 = arith.muli %24, %25 : vector<8x128xi32>
    %c15_i32_3 = arith.constant 15 : i32
    %27 = vector.broadcast %c15_i32_3 : i32 to vector<8x128xi32>
    %28 = arith.shrui %26, %27 : vector<8x128xi32>
    %29 = arith.xori %26, %28 : vector<8x128xi32>
    %c1935289751_i32_4 = arith.constant 1935289751 : i32
    %30 = vector.broadcast %c1935289751_i32_4 : i32 to vector<8x128xi32>
    %31 = arith.muli %29, %30 : vector<8x128xi32>
    %c15_i32_5 = arith.constant 15 : i32
    %32 = vector.broadcast %c15_i32_5 : i32 to vector<8x128xi32>
    %33 = arith.shrui %31, %32 : vector<8x128xi32>
    %34 = arith.xori %31, %33 : vector<8x128xi32>
    %c1_i32 = arith.constant 1 : i32
    %35 = vector.broadcast %c1_i32 : i32 to vector<8x128xi32>
    %36 = arith.addi %21, %35 : vector<8x128xi32>
    %c16_i32_6 = arith.constant 16 : i32
    %37 = vector.broadcast %c16_i32_6 : i32 to vector<8x128xi32>
    %38 = arith.shrui %36, %37 : vector<8x128xi32>
    %39 = arith.xori %36, %38 : vector<8x128xi32>
    %c569420461_i32_7 = arith.constant 569420461 : i32
    %40 = vector.broadcast %c569420461_i32_7 : i32 to vector<8x128xi32>
    %41 = arith.muli %39, %40 : vector<8x128xi32>
    %c15_i32_8 = arith.constant 15 : i32
    %42 = vector.broadcast %c15_i32_8 : i32 to vector<8x128xi32>
    %43 = arith.shrui %41, %42 : vector<8x128xi32>
    %44 = arith.xori %41, %43 : vector<8x128xi32>
    %c1935289751_i32_9 = arith.constant 1935289751 : i32
    %45 = vector.broadcast %c1935289751_i32_9 : i32 to vector<8x128xi32>
    %46 = arith.muli %44, %45 : vector<8x128xi32>
    %c15_i32_10 = arith.constant 15 : i32
    %47 = vector.broadcast %c15_i32_10 : i32 to vector<8x128xi32>
    %48 = arith.shrui %46, %47 : vector<8x128xi32>
    %49 = arith.xori %46, %48 : vector<8x128xi32>
    %c16777215_i32 = arith.constant 16777215 : i32
    %50 = vector.broadcast %c16777215_i32 : i32 to vector<8x128xi32>
    %51 = arith.andi %34, %50 : vector<8x128xi32>
    %52 = arith.sitofp %51 : vector<8x128xi32> to vector<8x128xf32>
    %cst = arith.constant 5.000000e-01 : f32
    %53 = vector.broadcast %cst : f32 to vector<8x128xf32>
    %54 = arith.addf %52, %53 : vector<8x128xf32>
    %cst_11 = arith.constant 5.96046448E-8 : f32
    %55 = vector.broadcast %cst_11 : f32 to vector<8x128xf32>
    %56 = arith.mulf %54, %55 : vector<8x128xf32>
    %c16777215_i32_12 = arith.constant 16777215 : i32
    %57 = vector.broadcast %c16777215_i32_12 : i32 to vector<8x128xi32>
    %58 = arith.andi %49, %57 : vector<8x128xi32>
    %59 = arith.sitofp %58 : vector<8x128xi32> to vector<8x128xf32>
    %cst_13 = arith.constant 5.000000e-01 : f32
    %60 = vector.broadcast %cst_13 : f32 to vector<8x128xf32>
    %61 = arith.addf %59, %60 : vector<8x128xf32>
    %cst_14 = arith.constant 5.96046448E-8 : f32
    %62 = vector.broadcast %cst_14 : f32 to vector<8x128xf32>
    %63 = arith.mulf %61, %62 : vector<8x128xf32>
    %64 = math.log %56 : vector<8x128xf32>
    %cst_15 = arith.constant -2.000000e+00 : f32
    %65 = vector.broadcast %cst_15 : f32 to vector<8x128xf32>
    %66 = arith.mulf %65, %64 : vector<8x128xf32>
    %67 = math.sqrt %66 : vector<8x128xf32>
    %cst_16 = arith.constant 1.000000e-01 : f32
    %68 = vector.broadcast %cst_16 : f32 to vector<8x128xf32>
    %69 = arith.mulf %68, %67 : vector<8x128xf32>
    %cst_17 = arith.constant 6.28318548 : f32
    %70 = vector.broadcast %cst_17 : f32 to vector<8x128xf32>
    %71 = arith.mulf %70, %63 : vector<8x128xf32>
    %72 = math.cos %71 : vector<8x128xf32>
    %73 = arith.mulf %69, %72 : vector<8x128xf32>
    %74 = math.sin %71 : vector<8x128xf32>
    %75 = arith.mulf %69, %74 : vector<8x128xf32>
    %76 = tpu.concatenate %73, %75 in 0 : vector<8x128xf32>, vector<8x128xf32> -> vector<16x128xf32>
    %c0_18 = arith.constant 0 : index
    %c0_19 = arith.constant 0 : index
    %77 = vector.load %arg2[%c0_18, %c0_19] : memref<16x128xf32, #tpu.memory_space<vmem>>, vector<16x128xf32>
    %78 = arith.addf %77, %76 : vector<16x128xf32>
    %c0_20 = arith.constant 0 : index
    %c0_21 = arith.constant 0 : index
    %79 = vector.load %arg3[%c0_20, %c0_21] : memref<16x128xf32, #tpu.memory_space<vmem>>, vector<16x128xf32>
    tpu.vector_store %arg3[%c0_20, %c0_21], %78 {strides = array<i32>} : memref<16x128xf32, #tpu.memory_space<vmem>>, vector<16x128xf32>,
    return
  }
  func.func @transform_0(%arg0: i32, %arg1: memref<1xi32, #tpu.memory_space<smem>>) -> (i32, i32) {
    %c0_i32 = arith.constant 0 : i32
    %c0_i32_0 = arith.constant 0 : i32
    return %arg0, %c0_i32 : i32, i32
  }
  func.func @transform_1(%arg0: i32, %arg1: memref<1xi32, #tpu.memory_space<smem>>) -> (i32, i32) {
    %c0_i32 = arith.constant 0 : i32
    %c0_i32_0 = arith.constant 0 : i32
    return %arg0, %c0_i32 : i32, i32
  }
}

</mosaic_0001>

<llo_original>
// kernel: tpu_custom_call.1
$region0: #{tpu_custom_call.1}
  #allocation0 [shape = 'u32[]', space=smem, size = 0x4, offset = 0x4, fixed_abs, tag = 'smem constant byte address 0x4 - core index']
  #allocation1 [shape = 'u32[144,128]{1,0:T(1,128)}', space=vmem, size = 0x12000, scoped, tag = 'internal scratch']
  #allocation2 [shape = 's32[1]{0}', space=sflag, size = 0x4, scoped, tag = 'scoped memory for tpu_custom_call.1']
  #allocation3 [shape = 's32[1]{0:T(128)S(6)}', space=smem, size = 0x200, scoped, tag = 'prefetched SMEM operand 0']
  %s0 = inlined_call_operand.<no memory space> [shape: s32[1], index: 0, kind: input, shape index: {}]
  %s1 = inlined_call_operand.hbm [shape: f32[16,128], index: 1, kind: input, shape index: {}]
  %s2 = inlined_call_operand.hbm [shape: f32[16,128], index: 2, kind: output, shape index: {}]
  %s3 = sld [smem:[#allocation0]]
  $region18: #{tpu_custom_call.1} parent=0
    _
  %s5 = ssub.s32 1, %s3
  %s6 = scalar_select 0, %s5, %s3
  %7 = sst [smem:[#allocation3]] %s0
  $region1: #{tpu_custom_call.1} parent=0
    #allocation4 [shape = 'u8[8192]{0}', space=vmem, size = 0x2000, scoped, tag = 'input window, operand 1, single buffered']
    #allocation5 [shape = 's32[1]{0}', space=sflag, size = 0x4, scoped, tag = 'scoped memory for tpu_custom_call.1']
    #allocation6 [shape = 's32[1]{0}', space=sflag, size = 0x4, scoped, tag = 'scoped memory for tpu_custom_call.1']
    #allocation7 [shape = 'u8[8192]{0}', space=vmem, size = 0x2000, scoped, tag = 'output window, operand 0, single buffered']
    %8 = vsyncpa [#allocation5], 0
    %9 = vsyncpa [#allocation6], 0
    // Predicated region
    $region2: #{tpu_custom_call.1} parent=1 // pred_check
      _
    $region3: #{tpu_custom_call.1} parent=1 // pred_check_branch
      %11 = sbr.rel (0) target = $region5
    $region4: #{tpu_custom_call.1} parent=1 // pred_region
      %s13 = ssub.s32 256, 256
      %14 = vsyncadd [#allocation5], %s13
      %s15 = sshll.u32 [#allocation4], 4
      %s16 = int_to_ptr.vmem [resolvable:$true] %s15
      %21 = dma.hbm_to_vmem [thread:$0]  %s1, 256, %s16, [#allocation5], 128, 128, 8
    $region5: #{tpu_custom_call.1} parent=1 // pred_fallthru
      _
    // Predicated region
    $region6: #{tpu_custom_call.1} parent=1 // pred_check
      _
    $region7: #{tpu_custom_call.1} parent=1 // pred_check_branch
      %23 = sbr.rel (0) target = $region9
    $region8: #{tpu_custom_call.1} parent=1 // pred_region
      %24 = dma.done [#allocation5], 256
    $region9: #{tpu_custom_call.1} parent=1 // pred_fallthru
      _
    %s25 = smul.u32 0, 1024
    %v26 = vlaneseq
    %v27 = vshrl.u32 %v26, 7
    %v28 = vlaneseq
    %v29 = vand.u32 %v28, 127
    %v30 = vmul.u32 %v27, 128
    %v31 = vstv %s25
    %v32 = vadd.s32 %v31, %v30
    %v33 = vadd.s32 %v32, %v29
    %s34 = sld [smem:[#allocation3]]
    %s35 = sadd.s32 %s34, 2654435769
    %s36 = sshrl.u32 %s35, 16
    %s37 = sxor.u32 %s35, %s36
    %s38 = smul.u32 %s37, 569420461
    %s39 = sshrl.u32 %s38, 15
    %s40 = sxor.u32 %s38, %s39
    %s41 = smul.u32 %s40, 1935289751
    %s42 = sshrl.u32 %s41, 15
    %s43 = sxor.u32 %s41, %s42
    %v44 = vstv %s43
    %v45 = vadd.s32 %v33, %v44
    %v46 = vmul.u32 %v45, 2
    %v47 = vshrl.u32 %v46, 16
    %v48 = vxor.u32 %v46, %v47
    %v49 = vmul.u32 %v48, 569420461
    %v50 = vshrl.u32 %v49, 15
    %v51 = vxor.u32 %v49, %v50
    %v52 = vmul.u32 %v51, 1935289751
    %v53 = vshrl.u32 %v52, 15
    %v54 = vxor.u32 %v52, %v53
    %v55 = vadd.s32 %v46, 1
    %v56 = vshrl.u32 %v55, 16
    %v57 = vxor.u32 %v55, %v56
    %v58 = vmul.u32 %v57, 569420461
    %v59 = vshrl.u32 %v58, 15
    %v60 = vxor.u32 %v58, %v59
    %v61 = vmul.u32 %v60, 1935289751
    %v62 = vshrl.u32 %v61, 15
    %v63 = vxor.u32 %v61, %v62
    %v64 = vand.u32 %v54, 16777215
    %v65 = vcvt.s32.f32 %v64
    %v66 = vadd.f32 %v65, 0.5
    %v67 = vmul.f32 %v66, 5.9604645e-08
    %v68 = vand.u32 %v63, 16777215
    %v69 = vcvt.s32.f32 %v68
    %v70 = vadd.f32 %v69, 0.5
    %v71 = vmul.f32 %v70, 5.9604645e-08
    %v72 = vlog2.pop %v67
    %v73 = vmul.f32 %v72, 0.6931472
    %v74 = vmul.f32 %v73, -2.0
    %v75 = vrsqrt.pop %v74
    %v76 = vmul.f32 %v74, %v75
    %vm77 = vcmp.eq.f32.partialorder %v74, inf
    %v78 = vsel %vm77, %v74, %v76
    %vm79 = vcmp.eq.f32.partialorder %v74, 0.0
    %v80 = vand.u32 %v74, 2147483648
    %v81 = vsel %vm79, %v80, %v78
    %v82 = vmul.f32 %v81, 0.1
    %v83 = vmul.f32 %v71, 6.2831855
    %v84 = vand.u32 2147483647, %v83
    %vm85 = vcmp.le.f32.partialorder %v84, 0.7853982
    %vm86 = vcmp.lt.s32.totalorder %v83, 0
    %v87 = vand.u32 %v83, 2139095040
    %v88 = vshrl.u32 %v87, 23
    %v89 = vsub.s32 %v88, 127
    %v90 = vand.u32 2147483647, %v83
    %v91 = vand.u32 %v90, 8388607
    %v92 = vor.u32 %v91, 8388608
    %v93 = vsub.s32 0, %v92
    %v94 = vadd.s32 %v89, 1
    %vm95 = vcmp.gt.s32.totalorder %v94, 0
    %v96 = vsel %vm95, %v94, 0
    %v97 = vshrl.u32 %v96, 5
    %v98 = vand.u32 %v96, 31
    %v99 = vsub.s32 32, %v98
    %v100 = vshrl.u32 683565275, %v99
    %v101 = vshll.u32 683565275, %v98
    %v102 = vshrl.u32 2475754826, %v99
    %v103 = vor.u32 %v101, %v102
    %v104 = vshll.u32 2475754826, %v98
    %v105 = vshrl.u32 2131351028, %v99
    %v106 = vor.u32 %v104, %v105
    %v107 = vshll.u32 2131351028, %v98
    %v108 = vshrl.u32 2102212464, %v99
    %v109 = vor.u32 %v107, %v108
    %v110 = vshll.u32 2102212464, %v98
    %v111 = vshrl.u32 920167782, %v99
    %v112 = vor.u32 %v110, %v111
    %v113 = vshll.u32 920167782, %v98
    %v114 = vshrl.u32 1326507024, %v99
    %v115 = vor.u32 %v113, %v114
    %vm116 = vcmp.lt.s32.totalorder %v97, 1
    %vm117 = vcmp.lt.s32.totalorder %v97, 2
    %vm118 = vcmp.lt.s32.totalorder %v97, 3
    %vm119 = vcmp.lt.s32.totalorder %v97, 4
    %v120 = vsel %vm116, %v100, %v103
    %v121 = vsel %vm119, %v109, 2102212464
    %v122 = vsel %vm118, %v106, %v121
    %v123 = vsel %vm117, %v120, %v122
    %v124 = vsel %vm116, %v103, %v106
    %v125 = vsel %vm119, %v112, 920167782
    %v126 = vsel %vm118, %v109, %v125
    %v127 = vsel %vm117, %v124, %v126
    %v128 = vsel %vm116, %v106, %v109
    %v129 = vsel %vm119, %v115, 1326507024
    %v130 = vsel %vm118, %v112, %v129
    %v131 = vsel %vm117, %v128, %v130
    %v132 = vshll.u32 %v92, 8
    %v133 = vmul.u32.u64.compose %v132, %v131
    %v134 = vextract.low.u32 %v133
    %v135 = vextract.high.u32 %v133
    %v136 = vmul.u32.u64.compose %v132, %v127
    %v137 = vextract.low.u32 %v136
    %v138 = vextract.high.u32 %v136
    %v139 = vmul.u32 %v132, %v123
    %v140 = vadd.s32 %v135, %v137
    %vm141 = vc.u32 %v135, %v137
    %v142 = vadd.s32 %v138, 1
    %v143 = vsel %vm141, %v142, %v138
    %v144 = vadd.s32 %v139, %v143
    %v145 = vadd.s32 %v144, 536870912
    %v146 = vshrl.u32 %v145, 30
    %v147 = vshll.u32 %v146, 30
    %v148 = vsub.s32 %v144, %v147
    %vm149 = vcmp.lt.s32.totalorder %v148, 0
    %v150 = vsub.s32 0, %v148
    %v151 = vsel %vm149, %v150, %v148
    %v152 = vclz %v151
    %v153 = vsub.s32 %v152, 2
    %vm154 = vcmp.gt.s32.totalorder 0, %v153
    %v155 = vsel %vm154, 0, %v153
    %v156 = vsub.s32 32, %v155
    %v157 = vshll.u32 %v148, %v155
    %v158 = vshrl.u32 %v140, %v156
    %v159 = vor.u32 %v157, %v158
    %v160 = vsub.s32 4294967266, %v155
    %v161 = vadd.s32 %v160, 127
    %v162 = vshll.u32 %v161, 23
    %v163 = vor.u32 4788187, %v162
    %v164 = vand.u32 2147483647, %v163
    %v166 = vcvt.s32.f32 %v159
    %v167 = vmul.f32 %v166, %v164
    %v168 = vxor.u32 %v167, 2147483648
    %v169 = vsel %vm86, %v168, %v167
    %v170 = vsub.s32 4, %v146
    %v171 = vsel %vm86, %v170, %v146
    %v172 = vsel %vm85, %v83, %v169
    %v173 = vsel %vm85, 0, %v171
    %v174 = vcosq.f32.pop %v172
    %v175 = vsinq.f32.pop %v172
    %vm176 = vweird.f32 %v83
    %v177 = vand.u32 %v173, 3
    %vm178 = vcmp.lt.s32.totalorder %v177, 2
    %vm179 = vcmp.eq.s32.totalorder %v177, 0
    %v180 = vxor.u32 %v175, 2147483648
    %v181 = vsel %vm179, %v174, %v180
    %vm182 = vcmp.eq.s32.totalorder %v177, 2
    %v183 = vxor.u32 %v174, 2147483648
    %v184 = vsel %vm182, %v183, %v175
    %v185 = vsel %vm178, %v181, %v184
    %v186 = vsel %vm176, nan, %v185
    %v187 = vmul.f32 %v82, %v186
    %v188 = vand.u32 2147483647, %v83
    %vm189 = vcmp.le.f32.partialorder %v188, 0.7853982
    %vm190 = vcmp.lt.s32.totalorder %v83, 0
    %v191 = vand.u32 %v83, 2139095040
    %v192 = vshrl.u32 %v191, 23
    %v193 = vsub.s32 %v192, 127
    %v194 = vand.u32 2147483647, %v83
    %v195 = vand.u32 %v194, 8388607
    %v196 = vor.u32 %v195, 8388608
    %v197 = vsub.s32 0, %v196
    %v198 = vadd.s32 %v193, 1
    %vm199 = vcmp.gt.s32.totalorder %v198, 0
    %v200 = vsel %vm199, %v198, 0
    %v201 = vshrl.u32 %v200, 5
    %v202 = vand.u32 %v200, 31
    %v203 = vsub.s32 32, %v202
    %v204 = vshrl.u32 683565275, %v203
    %v205 = vshll.u32 683565275, %v202
    %v206 = vshrl.u32 2475754826, %v203
    %v207 = vor.u32 %v205, %v206
    %v208 = vshll.u32 2475754826, %v202
    %v209 = vshrl.u32 2131351028, %v203
    %v210 = vor.u32 %v208, %v209
    %v211 = vshll.u32 2131351028, %v202
    %v212 = vshrl.u32 2102212464, %v203
    %v213 = vor.u32 %v211, %v212
    %v214 = vshll.u32 2102212464, %v202
    %v215 = vshrl.u32 920167782, %v203
    %v216 = vor.u32 %v214, %v215
    %v217 = vshll.u32 920167782, %v202
    %v218 = vshrl.u32 1326507024, %v203
    %v219 = vor.u32 %v217, %v218
    %vm220 = vcmp.lt.s32.totalorder %v201, 1
    %vm221 = vcmp.lt.s32.totalorder %v201, 2
    %vm222 = vcmp.lt.s32.totalorder %v201, 3
    %vm223 = vcmp.lt.s32.totalorder %v201, 4
    %v224 = vsel %vm220, %v204, %v207
    %v225 = vsel %vm223, %v213, 2102212464
    %v226 = vsel %vm222, %v210, %v225
    %v227 = vsel %vm221, %v224, %v226
    %v228 = vsel %vm220, %v207, %v210
    %v229 = vsel %vm223, %v216, 920167782
    %v230 = vsel %vm222, %v213, %v229
    %v231 = vsel %vm221, %v228, %v230
    %v232 = vsel %vm220, %v210, %v213
    %v233 = vsel %vm223, %v219, 1326507024
    %v234 = vsel %vm222, %v216, %v233
    %v235 = vsel %vm221, %v232, %v234
    %v236 = vshll.u32 %v196, 8
    %v237 = vmul.u32.u64.compose %v236, %v235
    %v238 = vextract.low.u32 %v237
    %v239 = vextract.high.u32 %v237
    %v240 = vmul.u32.u64.compose %v236, %v231
    %v241 = vextract.low.u32 %v240
    %v242 = vextract.high.u32 %v240
    %v243 = vmul.u32 %v236, %v227
    %v244 = vadd.s32 %v239, %v241
    %vm245 = vc.u32 %v239, %v241
    %v246 = vadd.s32 %v242, 1
    %v247 = vsel %vm245, %v246, %v242
    %v248 = vadd.s32 %v243, %v247
    %v249 = vadd.s32 %v248, 536870912
    %v250 = vshrl.u32 %v249, 30
    %v251 = vshll.u32 %v250, 30
    %v252 = vsub.s32 %v248, %v251
    %vm253 = vcmp.lt.s32.totalorder %v252, 0
    %v254 = vsub.s32 0, %v252
    %v255 = vsel %vm253, %v254, %v252
    %v256 = vclz %v255
    %v257 = vsub.s32 %v256, 2
    %vm258 = vcmp.gt.s32.totalorder 0, %v257
    %v259 = vsel %vm258, 0, %v257
    %v260 = vsub.s32 32, %v259
    %v261 = vshll.u32 %v252, %v259
    %v262 = vshrl.u32 %v244, %v260
    %v263 = vor.u32 %v261, %v262
    %v264 = vsub.s32 4294967266, %v259
    %v265 = vadd.s32 %v264, 127
    %v266 = vshll.u32 %v265, 23
    %v267 = vor.u32 4788187, %v266
    %v268 = vand.u32 2147483647, %v267
    %v270 = vcvt.s32.f32 %v263
    %v271 = vmul.f32 %v270, %v268
    %v272 = vxor.u32 %v271, 2147483648
    %v273 = vsel %vm190, %v272, %v271
    %v274 = vsub.s32 4, %v250
    %v275 = vsel %vm190, %v274, %v250
    %v276 = vsel %vm189, %v83, %v273
    %v277 = vsel %vm189, 0, %v275
    %v278 = vcosq.f32.pop %v276
    %v279 = vsinq.f32.pop %v276
    %vm280 = vweird.f32 %v83
    %v281 = vadd.s32 %v277, 3
    %v282 = vand.u32 %v281, 3
    %vm283 = vcmp.lt.s32.totalorder %v282, 2
    %vm284 = vcmp.eq.s32.totalorder %v282, 0
    %v285 = vxor.u32 %v279, 2147483648
    %v286 = vsel %vm284, %v278, %v285
    %vm287 = vcmp.eq.s32.totalorder %v282, 2
    %v288 = vxor.u32 %v278, 2147483648
    %v289 = vsel %vm287, %v288, %v279
    %v290 = vsel %vm283, %v286, %v289
    %v291 = vsel %vm280, nan, %v290
    %v292 = vmul.f32 %v82, %v291
    %v293 = vld [vmem:[#allocation4] sm:$0xff]
    %v294 = vld [vmem:[#allocation4 + $0x8] sm:$0xff]
    %v295 = vadd.f32 %v293, %v187
    %v296 = vadd.f32 %v294, %v292
    %297 = vst [vmem:[#allocation7] sm:$0xff] %v295
    %298 = vst [vmem:[#allocation7 + $0x8] sm:$0xff] %v296
    // Predicated region
    $region10: #{tpu_custom_call.1} parent=1 // pred_check
      _
    $region11: #{tpu_custom_call.1} parent=1 // pred_check_branch
      %300 = sbr.rel (0) target = $region13
    $region12: #{tpu_custom_call.1} parent=1 // pred_region
      %s302 = ssub.s32 256, 256
      %303 = vsyncadd [#allocation6], %s302
      %s304 = sshll.u32 [#allocation7], 4
      %s305 = int_to_ptr.vmem [resolvable:$true] %s304
      %310 = dma.vmem_to_hbm [thread:$0]  %s305, 256, %s2, [#allocation6], 128, 128, 8
    $region13: #{tpu_custom_call.1} parent=1 // pred_fallthru
      _
    // Predicated region
    $region14: #{tpu_custom_call.1} parent=1 // pred_check
      _
    $region15: #{tpu_custom_call.1} parent=1 // pred_check_branch
      %312 = sbr.rel (0) target = $region17
    $region16: #{tpu_custom_call.1} parent=1 // pred_region
      %313 = dma.done [#allocation6], 256
    $region17: #{tpu_custom_call.1} parent=1 // pred_fallthru
      _
    %314 = vsyncpa [#allocation5], 1
    %315 = vsyncpa [#allocation6], 1

</llo_original>
